<compile_context>
chip_gen: v7x
topology: tpu7x:2x2x1
jax: 0.10.0
libtpu: 0.0.40
codegen_flags: <defaults>
</compile_context>

<pallas_src>
import functools
import math

import numpy as np
import jax
import jax.numpy as jnp
from jax import lax
from jax.experimental import pallas as pl
from jax.experimental.pallas import tpu as pltpu


def _pick_tile(n, *, bytes_per_lane, budget_bytes, max_tile, min_tile=128):
    """Largest power-of-two lane tile dividing n that fits the double-buffered
    VMEM budget, preferring >= 2 grid steps (pipelining / carry path)."""
    best_single = None
    t = max_tile
    while t >= min_tile:
        if t <= n and n % t == 0 and 2 * bytes_per_lane * t <= budget_bytes:
            if n // t >= 2:
                return t
            if best_single is None:
                best_single = t
        t //= 2
    return best_single if best_single is not None else min_tile


# ----------------------------- Kernel 1 -------------------------------------
def make_softmax_err_kernel(ignore_index: int):
    def kernel(logits_ref, labels_ref, negk_ref, fg_ref, psum_ref):
        x = logits_ref[...]                        # [C, TN] f32
        lab = labels_ref[...]                      # [1, TN] i32
        C, TN = x.shape

        # channel softmax along the sublane (class) axis
        m = jnp.max(x, axis=0, keepdims=True)
        e = jnp.exp(x - m)
        s = jnp.sum(e, axis=0, keepdims=True)
        p = e * pl.reciprocal(s, approx=False)     # exact: keeps sort ordering stable

        class_ids = lax.broadcasted_iota(jnp.int32, (C, TN), 0)
        lab_b = jnp.broadcast_to(lab, (C, TN))
        valid = lab_b != ignore_index
        fg = jnp.logical_and(lab_b == class_ids, valid).astype(jnp.float32)
        err = jnp.abs(fg - p)

        # negated sort key: ascending sort => errors descending; ignored (+1) last
        negk_ref[...] = jnp.where(valid, -err, 1.0)
        fg_ref[...] = fg.astype(jnp.bfloat16)      # 0/1 exact in bf16 (half bytes)
        # per-tile per-class foreground counts -> gts partial sums (lane-dense block)
        psum_ref[...] = jnp.broadcast_to(jnp.sum(fg, axis=1, keepdims=True), (C, 128))
    return kernel


# ----------------------------- Kernel 2 -------------------------------------
def lovasz_scan_kernel(gts_ref, masks_ref, negk_ref, fg_ref, out_ref,
                       cum_carry, jac_carry, loss_acc):
    t = pl.program_id(0)
    nt = pl.num_programs(0)
    C, TN = negk_ref.shape

    @pl.when(t == 0)
    def _init():
        cum_carry[...] = jnp.zeros_like(cum_carry)
        jac_carry[...] = jnp.zeros_like(jac_carry)
        loss_acc[...] = jnp.zeros_like(loss_acc)

    gts = gts_ref[...]                             # [C, 1] per-class fg count
    fg = fg_ref[...].astype(jnp.float32)           # [C, TN] sorted foreground (0/1)
    err = jnp.maximum(-negk_ref[...], 0.0)         # sorted masked errors (ignored -> 0)

    # within-tile inclusive prefix sum of fg: Hillis-Steele roll-and-add ladder.
    # (lane >= k) masks are precomputed constants -> single vmul per step.
    csum = fg
    k, step = 1, 0
    while k < TN:
        shifted = pltpu.roll(csum, shift=k, axis=1)        # axis must be non-negative
        csum = csum + shifted * masks_ref[pl.ds(step, 1), :]
        k *= 2
        step += 1
    cum_fg = csum + cum_carry[...]                 # global cumsum (exact 0/1 counts)

    lane = lax.broadcasted_iota(jnp.int32, (C, TN), 1)
    pos = (lane + t * TN).astype(jnp.float32) + 1.0        # global 1-based position
    intersection = gts - cum_fg
    union = gts + (pos - cum_fg)                   # == gts + cumsum(1 - fg), >= 1
    jac = 1.0 - intersection * pl.reciprocal(union, approx=False)

    # first difference: grad[i] = jac[i] - jac[i-1]; jac carried across tiles
    prev = pltpu.roll(jac, shift=1, axis=1)
    prev = jnp.where(lane == 0, jnp.broadcast_to(jac_carry[...], (C, TN)), prev)
    grad = jac - prev

    loss_acc[...] += jnp.sum(err * grad, axis=1, keepdims=True)   # [C, 1]

    # carry updates from [C,1] scalars (no lane slicing needed)
    cum_tot = cum_carry[...] + jnp.sum(fg, axis=1, keepdims=True)
    cum_carry[...] = cum_tot
    pos_last = ((t + 1) * TN).astype(jnp.float32)
    union_last = gts + (pos_last - cum_tot)
    jac_carry[...] = 1.0 - (gts - cum_tot) * pl.reciprocal(union_last, approx=False)

    @pl.when(t == nt - 1)
    def _finalize():
        present = (gts > 0.0).astype(jnp.float32)                      # classes='present'
        num = jnp.sum(loss_acc[...] * present, axis=0, keepdims=True)  # [1, 1]
        cnt = jnp.sum(present, axis=0, keepdims=True)                  # [1, 1]
        out_ref[...] = num / jnp.maximum(cnt, 1.0)


# ----------------------------- Wrapper --------------------------------------
def lovasz_softmax_loss(logits, target, ignore_index=255):
    """logits: [B, C, H, W] float, target: [B, H, W] int. Returns scalar f32 loss."""
    B, C, H, W = logits.shape
    HW = H * W
    N = B * HW
    assert HW % 128 == 0, "H*W must be a multiple of 128 (lane tiling)"

    # ---- Kernel 1: softmax + masked errors + gts partial sums, tiled over pixels ----
    # bytes per lane column (double-buffered): logits + labels in, negk(f32)+fg(bf16) out
    bpl1 = C * 4 + 4 + C * 4 + C * 2
    tn1 = _pick_tile(HW, bytes_per_lane=bpl1, budget_bytes=24 * 1024 * 1024,
                     max_tile=16384)
    num_t1 = HW // tn1
    T1 = B * num_t1

    logits_r = logits.reshape(B, C, HW).astype(jnp.float32)   # free reshape, no transpose
    labels_r = target.reshape(B, 1, HW).astype(jnp.int32)

    out_idx = lambda b, t: (0, b * num_t1 + t)
    negk, fg, psums = pl.pallas_call(
        make_softmax_err_kernel(ignore_index),
        out_shape=(
            jax.ShapeDtypeStruct((C, N), jnp.float32),
            jax.ShapeDtypeStruct((C, N), jnp.bfloat16),
            jax.ShapeDtypeStruct((C, 128 * T1), jnp.float32),
        ),
        grid=(B, num_t1),
        in_specs=[
            pl.BlockSpec((None, C, tn1), lambda b, t: (b, 0, t)),
            pl.BlockSpec((None, 1, tn1), lambda b, t: (b, 0, t)),
        ],
        out_specs=(
            pl.BlockSpec((C, tn1), out_idx),
            pl.BlockSpec((C, tn1), out_idx),
            pl.BlockSpec((C, 128), out_idx),
        ),
        compiler_params=pltpu.CompilerParams(
            dimension_semantics=("parallel", "parallel"),
            vmem_limit_bytes=40 * 1024 * 1024,
        ),
    )(logits_r, labels_r)

    # ---- Per-class descending sort (XLA; no Mosaic sort primitive) ----
    negk_sorted, fg_sorted = lax.sort((negk, fg), dimension=1, num_keys=1)

    # per-class foreground counts from the tiny kernel-1 partial sums (lane 0 of
    # each 128-wide block) — no full [C, N] re-read of fg.
    gts = psums.reshape(C, T1, 128)[:, :, 0].sum(axis=1, keepdims=True)   # [C, 1] f32

    # ---- Kernel 2: blocked lovasz_grad scan + dot + present-class mean ----
    bpl2 = C * 4 + C * 2                      # negk(f32) + fg(bf16); gts/masks resident
    tn2 = _pick_tile(N, bytes_per_lane=bpl2, budget_bytes=16 * 1024 * 1024,
                     max_tile=8192)
    num_t2 = N // tn2

    # precomputed ladder masks: row s == (lane >= 2**s), applied with one multiply
    L = int(round(math.log2(tn2)))
    shifts = jnp.asarray([1 << s for s in range(L)], dtype=jnp.int32)[:, None]   # (L,1)
    lane_ids = jnp.arange(tn2, dtype=jnp.int32)[None, :]                          # (1,tn2)
    ladder_masks = (lane_ids >= shifts).astype(jnp.float32)                       # (L,tn2)

    loss = pl.pallas_call(
        lovasz_scan_kernel,
        out_shape=jax.ShapeDtypeStruct((1, 1), jnp.float32),
        grid=(num_t2,),
        in_specs=[
            pl.BlockSpec((C, 1), lambda t: (0, 0)),
            pl.BlockSpec((L, tn2), lambda t: (0, 0)),
            pl.BlockSpec((C, tn2), lambda t: (0, t)),
            pl.BlockSpec((C, tn2), lambda t: (0, t)),
        ],
        out_specs=pl.BlockSpec((1, 1), lambda t: (0, 0)),
        scratch_shapes=[
            pltpu.VMEM((C, 1), jnp.float32),   # cumsum carry
            pltpu.VMEM((C, 1), jnp.float32),   # jaccard carry
            pltpu.VMEM((C, 1), jnp.float32),   # per-class loss accumulator
        ],
        compiler_params=pltpu.CompilerParams(
            dimension_semantics=("arbitrary",),
            vmem_limit_bytes=32 * 1024 * 1024,
        ),
    )(gts, ladder_masks, negk_sorted, fg_sorted)
    return loss[0, 0]


# ----------------------------- Reference (numpy) ----------------------------
def lovasz_softmax_ref(logits, target, ignore=255):
    logits = np.asarray(logits, dtype=np.float64)
    target = np.asarray(target)
    B, C, H, W = logits.shape
    x = logits - logits.max(axis=1, keepdims=True)
    e = np.exp(x)
    probas = e / e.sum(axis=1, keepdims=True)
    probas = np.transpose(probas, (0, 2, 3, 1)).reshape(-1, C)
    labels = target.reshape(-1)
    valid = labels != ignore
    vprobas = probas[valid]
    vlabels = labels[valid]
    losses = []
    for c in range(C):
        fgc = (vlabels == c).astype(np.float64)
        if fgc.sum() == 0:
            continue
        errors = np.abs(fgc - vprobas[:, c])
        perm = np.argsort(-errors, kind="stable")
        errors_sorted = errors[perm]
        fg_sorted = fgc[perm]
        gts = fg_sorted.sum()
        intersection = gts - np.cumsum(fg_sorted)
        union = gts + np.cumsum(1.0 - fg_sorted)
        jaccard = 1.0 - intersection / union
        grad = jaccard.copy()
        grad[1:] = jaccard[1:] - jaccard[:-1]
        losses.append(float(np.dot(errors_sorted, grad)))
    return float(np.mean(losses)) if losses else 0.0


# ----------------------------- Main ------------------------------------------
if __name__ == "__main__":
    key = jax.random.PRNGKey(0)
    k1, k2 = jax.random.split(key)
    B, C, H, W = 2, 4, 16, 16
    logits = jax.random.normal(k1, (B, C, H, W), dtype=jnp.float32)
    target = jax.random.randint(k2, (B, H, W), 0, C, dtype=jnp.int32)
    # exercise the ignore_index path
    target = target.at[0, 0, :5].set(255)

    loss = jax.jit(functools.partial(lovasz_softmax_loss, ignore_index=255))(logits, target)
    loss = jax.block_until_ready(loss)

    ref = lovasz_softmax_ref(np.asarray(logits), np.asarray(target), ignore=255)
    assert np.allclose(float(loss), ref, rtol=1e-4, atol=1e-4), (float(loss), ref)
    print("KERNEL_OK")
</pallas_src>

<mosaic_0001>
module attributes {stable_mosaic.version = 11 : i64} {
  func.func @kernel(%arg0: i32, %arg1: i32, %arg2: memref<1x4x128xf32, #tpu.memory_space<vmem>>, %arg3: memref<1x1x128xi32, #tpu.memory_space<vmem>>, %arg4: memref<4x128xf32, #tpu.memory_space<vmem>>, %arg5: memref<4x128xbf16, #tpu.memory_space<vmem>>, %arg6: memref<4x128xf32, #tpu.memory_space<vmem>>) attributes {dimension_semantics = [#tpu.dimension_semantics<parallel>, #tpu.dimension_semantics<parallel>], iteration_bounds = array<i64: 2, 2>, scalar_prefetch = 0 : i64, scratch_operands = 0 : i64, tpu.core_type = #tpu.core_type<tc>, window_params = [{transform_indices = @transform_0, window_bounds = array<i64: 1, 4, 128>}, {transform_indices = @transform_1, window_bounds = array<i64: 1, 1, 128>}, {transform_indices = @transform_2, window_bounds = array<i64: 4, 128>}, {transform_indices = @transform_3, window_bounds = array<i64: 4, 128>}, {transform_indices = @transform_4, window_bounds = array<i64: 4, 128>}]} {
    %c0 = arith.constant 0 : index
    %c0_0 = arith.constant 0 : index
    %c0_1 = arith.constant 0 : index
    %0 = vector.load %arg2[%c0, %c0_0, %c0_1] : memref<1x4x128xf32, #tpu.memory_space<vmem>>, vector<1x4x128xf32>
    %1 = vector.shape_cast %0 : vector<1x4x128xf32> to vector<4x128xf32>
    %c0_2 = arith.constant 0 : index
    %c0_3 = arith.constant 0 : index
    %c0_4 = arith.constant 0 : index
    %2 = vector.load %arg3[%c0_2, %c0_3, %c0_4] : memref<1x1x128xi32, #tpu.memory_space<vmem>>, vector<1x1x128xi32>
    %3 = vector.shape_cast %2 : vector<1x1x128xi32> to vector<1x128xi32>
    %cst = arith.constant dense<0xFF800000> : vector<128xf32>
    %4 = vector.multi_reduction <maximumf>, %1, %cst [0] : vector<4x128xf32> to vector<128xf32>
    %5 = vector.shape_cast %4 : vector<128xf32> to vector<1x128xf32>
    %6 = vector.broadcast %5 : vector<1x128xf32> to vector<4x128xf32>
    %7 = arith.subf %1, %6 : vector<4x128xf32>
    %8 = math.exp %7 : vector<4x128xf32>
    %cst_5 = arith.constant dense<0.000000e+00> : vector<128xf32>
    %9 = vector.multi_reduction <add>, %8, %cst_5 [0] : vector<4x128xf32> to vector<128xf32>
    %10 = vector.shape_cast %9 : vector<128xf32> to vector<1x128xf32>
    %11 = tpu.reciprocal %10 : vector<1x128xf32> -> vector<1x128xf32>
    %12 = vector.broadcast %11 : vector<1x128xf32> to vector<4x128xf32>
    %13 = arith.mulf %8, %12 : vector<4x128xf32>
    %14 = tpu.iota {dimensions = array<i32: 0>} : vector<4x128xi32>
    %15 = vector.shape_cast %3 : vector<1x128xi32> to vector<1x128xi32>
    %16 = vector.broadcast %15 : vector<1x128xi32> to vector<4x128xi32>
    %c255_i32 = arith.constant 255 : i32
    %17 = vector.broadcast %c255_i32 : i32 to vector<4x128xi32>
    %18 = arith.cmpi ne, %16, %17 : vector<4x128xi32>
    %19 = arith.cmpi eq, %16, %14 : vector<4x128xi32>
    %20 = arith.andi %19, %18 : vector<4x128xi1>
    %21 = arith.extui %20 : vector<4x128xi1> to vector<4x128xi32>
    %22 = arith.sitofp %21 : vector<4x128xi32> to vector<4x128xf32>
    %23 = arith.subf %22, %13 : vector<4x128xf32>
    %24 = math.absf %23 : vector<4x128xf32>
    %cst_6 = arith.constant 0.000000e+00 : f32
    %25 = vector.broadcast %cst_6 : f32 to vector<4x128xf32>
    %26 = arith.subf %25, %24 : vector<4x128xf32>
    %cst_7 = arith.constant 1.000000e+00 : f32
    %27 = vector.broadcast %cst_7 : f32 to vector<4x128xf32>
    %28 = arith.select %18, %26, %27 : vector<4x128xi1>, vector<4x128xf32>
    %c0_8 = arith.constant 0 : index
    %c0_9 = arith.constant 0 : index
    %29 = vector.load %arg4[%c0_8, %c0_9] : memref<4x128xf32, #tpu.memory_space<vmem>>, vector<4x128xf32>
    tpu.vector_store %arg4[%c0_8, %c0_9], %28 {strides = array<i32>} : memref<4x128xf32, #tpu.memory_space<vmem>>, vector<4x128xf32>,
    %30 = arith.truncf %22 : vector<4x128xf32> to vector<4x128xbf16>
    %c0_10 = arith.constant 0 : index
    %c0_11 = arith.constant 0 : index
    %31 = vector.load %arg5[%c0_10, %c0_11] : memref<4x128xbf16, #tpu.memory_space<vmem>>, vector<4x128xbf16>
    tpu.vector_store %arg5[%c0_10, %c0_11], %30 {strides = array<i32>} : memref<4x128xbf16, #tpu.memory_space<vmem>>, vector<4x128xbf16>,
    %cst_12 = arith.constant dense<0.000000e+00> : vector<4xf32>
    %32 = vector.multi_reduction <add>, %22, %cst_12 [1] : vector<4x128xf32> to vector<4xf32>
    %33 = vector.shape_cast %32 : vector<4xf32> to vector<4x1xf32>
    %34 = vector.shape_cast %33 : vector<4x1xf32> to vector<4x1xf32>
    %35 = vector.broadcast %34 : vector<4x1xf32> to vector<4x128xf32>
    %c0_13 = arith.constant 0 : index
    %c0_14 = arith.constant 0 : index
    %36 = vector.load %arg6[%c0_13, %c0_14] : memref<4x128xf32, #tpu.memory_space<vmem>>, vector<4x128xf32>
    tpu.vector_store %arg6[%c0_13, %c0_14], %35 {strides = array<i32>} : memref<4x128xf32, #tpu.memory_space<vmem>>, vector<4x128xf32>,
    return
  }
  func.func @transform_0(%arg0: i32, %arg1: i32) -> (i32, i32, i32) {
    %c0_i32 = arith.constant 0 : i32
    %c0_i32_0 = arith.constant 0 : i32
    return %arg0, %c0_i32, %arg1 : i32, i32, i32
  }
  func.func @transform_1(%arg0: i32, %arg1: i32) -> (i32, i32, i32) {
    %c0_i32 = arith.constant 0 : i32
    %c0_i32_0 = arith.constant 0 : i32
    return %arg0, %c0_i32, %arg1 : i32, i32, i32
  }
  func.func @transform_2(%arg0: i32, %arg1: i32) -> (i32, i32) {
    %c2_i32 = arith.constant 2 : i32
    %0 = arith.muli %arg0, %c2_i32 : i32
    %1 = arith.addi %0, %arg1 : i32
    %c0_i32 = arith.constant 0 : i32
    %c0_i32_0 = arith.constant 0 : i32
    return %c0_i32, %1 : i32, i32
  }
  func.func @transform_3(%arg0: i32, %arg1: i32) -> (i32, i32) {
    %c2_i32 = arith.constant 2 : i32
    %0 = arith.muli %arg0, %c2_i32 : i32
    %1 = arith.addi %0, %arg1 : i32
    %c0_i32 = arith.constant 0 : i32
    %c0_i32_0 = arith.constant 0 : i32
    return %c0_i32, %1 : i32, i32
  }
  func.func @transform_4(%arg0: i32, %arg1: i32) -> (i32, i32) {
    %c2_i32 = arith.constant 2 : i32
    %0 = arith.muli %arg0, %c2_i32 : i32
    %1 = arith.addi %0, %arg1 : i32
    %c0_i32 = arith.constant 0 : i32
    %c0_i32_0 = arith.constant 0 : i32
    return %c0_i32, %1 : i32, i32
  }
}

module attributes {stable_mosaic.version = 11 : i64} {
  func.func @lovasz_scan_kernel(%arg0: i32, %arg1: memref<4x1xf32, #tpu.memory_space<vmem>>, %arg2: memref<8x256xf32, #tpu.memory_space<vmem>>, %arg3: memref<4x256xf32, #tpu.memory_space<vmem>>, %arg4: memref<4x256xbf16, #tpu.memory_space<vmem>>, %arg5: memref<1x1xf32, #tpu.memory_space<vmem>>, %arg6: memref<4x1xf32, #tpu.memory_space<vmem>>, %arg7: memref<4x1xf32, #tpu.memory_space<vmem>>, %arg8: memref<4x1xf32, #tpu.memory_space<vmem>>) attributes {dimension_semantics = [#tpu.dimension_semantics<arbitrary>], iteration_bounds = array<i64: 2>, scalar_prefetch = 0 : i64, scratch_operands = 3 : i64, tpu.core_type = #tpu.core_type<tc>, window_params = [{pipeline_mode = #tpu.pipeline_mode<synchronous>, transform_indices = @transform_0, window_bounds = array<i64: 4, 1>}, {pipeline_mode = #tpu.pipeline_mode<synchronous>, transform_indices = @transform_1, window_bounds = array<i64: 8, 256>}, {transform_indices = @transform_2, window_bounds = array<i64: 4, 256>}, {transform_indices = @transform_3, window_bounds = array<i64: 4, 256>}, {pipeline_mode = #tpu.pipeline_mode<synchronous>, transform_indices = @transform_4, window_bounds = array<i64: 1, 1>}]} {
    %c0_i32 = arith.constant 0 : i32
    %0 = arith.cmpi eq, %arg0, %c0_i32 : i32
    %1 = arith.extui %0 : i1 to i32
    %c0_i32_0 = arith.constant 0 : i32
    %2 = arith.cmpi ne, %1, %c0_i32_0 : i32
    scf.if %2 {
      %cst_41 = arith.constant 0.000000e+00 : f32
      %104 = vector.broadcast %cst_41 : f32 to vector<4x1xf32>
      %c0_42 = arith.constant 0 : index
      %c0_43 = arith.constant 0 : index
      %105 = vector.load %arg6[%c0_42, %c0_43] : memref<4x1xf32, #tpu.memory_space<vmem>>, vector<4x1xf32>
      tpu.vector_store %arg6[%c0_42, %c0_43], %104 {strides = array<i32>} : memref<4x1xf32, #tpu.memory_space<vmem>>, vector<4x1xf32>,
      %cst_44 = arith.constant 0.000000e+00 : f32
      %106 = vector.broadcast %cst_44 : f32 to vector<4x1xf32>
      %c0_45 = arith.constant 0 : index
      %c0_46 = arith.constant 0 : index
      %107 = vector.load %arg7[%c0_45, %c0_46] : memref<4x1xf32, #tpu.memory_space<vmem>>, vector<4x1xf32>
      tpu.vector_store %arg7[%c0_45, %c0_46], %106 {strides = array<i32>} : memref<4x1xf32, #tpu.memory_space<vmem>>, vector<4x1xf32>,
      %cst_47 = arith.constant 0.000000e+00 : f32
      %108 = vector.broadcast %cst_47 : f32 to vector<4x1xf32>
      %c0_48 = arith.constant 0 : index
      %c0_49 = arith.constant 0 : index
      %109 = vector.load %arg8[%c0_48, %c0_49] : memref<4x1xf32, #tpu.memory_space<vmem>>, vector<4x1xf32>
      tpu.vector_store %arg8[%c0_48, %c0_49], %108 {strides = array<i32>} : memref<4x1xf32, #tpu.memory_space<vmem>>, vector<4x1xf32>,
    } else {
    }
    %c0 = arith.constant 0 : index
    %c0_1 = arith.constant 0 : index
    %3 = vector.load %arg1[%c0, %c0_1] : memref<4x1xf32, #tpu.memory_space<vmem>>, vector<4x1xf32>
    %c0_2 = arith.constant 0 : index
    %c0_3 = arith.constant 0 : index
    %4 = vector.load %arg4[%c0_2, %c0_3] : memref<4x256xbf16, #tpu.memory_space<vmem>>, vector<4x256xbf16>
    %5 = arith.extf %4 : vector<4x256xbf16> to vector<4x256xf32>
    %c0_4 = arith.constant 0 : index
    %c0_5 = arith.constant 0 : index
    %6 = vector.load %arg3[%c0_4, %c0_5] : memref<4x256xf32, #tpu.memory_space<vmem>>, vector<4x256xf32>
    %cst = arith.constant 0.000000e+00 : f32
    %7 = vector.broadcast %cst : f32 to vector<4x256xf32>
    %8 = arith.subf %7, %6 : vector<4x256xf32>
    %cst_6 = arith.constant 0.000000e+00 : f32
    %9 = vector.broadcast %cst_6 : f32 to vector<4x256xf32>
    %10 = arith.maximumf %8, %9 : vector<4x256xf32>
    %c1_i32 = arith.constant 1 : i32
    %11 = tpu.dynamic_rotate %5 by %c1_i32 dim 1 : vector<4x256xf32>, i32 -> vector<4x256xf32>
    %c0_7 = arith.constant 0 : index
    %c0_8 = arith.constant 0 : index
    %12 = vector.load %arg2[%c0_7, %c0_8] : memref<8x256xf32, #tpu.memory_space<vmem>>, vector<1x256xf32>
    %13 = vector.broadcast %12 : vector<1x256xf32> to vector<4x256xf32>
    %14 = arith.mulf %11, %13 : vector<4x256xf32>
    %15 = arith.addf %5, %14 : vector<4x256xf32>
    %c2_i32 = arith.constant 2 : i32
    %16 = tpu.dynamic_rotate %15 by %c2_i32 dim 1 : vector<4x256xf32>, i32 -> vector<4x256xf32>
    %c1 = arith.constant 1 : index
    %c0_9 = arith.constant 0 : index
    %17 = vector.load %arg2[%c1, %c0_9] : memref<8x256xf32, #tpu.memory_space<vmem>>, vector<1x256xf32>
    %18 = vector.broadcast %17 : vector<1x256xf32> to vector<4x256xf32>
    %19 = arith.mulf %16, %18 : vector<4x256xf32>
    %20 = arith.addf %15, %19 : vector<4x256xf32>
    %c4_i32 = arith.constant 4 : i32
    %21 = tpu.dynamic_rotate %20 by %c4_i32 dim 1 : vector<4x256xf32>, i32 -> vector<4x256xf32>
    %c2 = arith.constant 2 : index
    %c0_10 = arith.constant 0 : index
    %22 = vector.load %arg2[%c2, %c0_10] : memref<8x256xf32, #tpu.memory_space<vmem>>, vector<1x256xf32>
    %23 = vector.broadcast %22 : vector<1x256xf32> to vector<4x256xf32>
    %24 = arith.mulf %21, %23 : vector<4x256xf32>
    %25 = arith.addf %20, %24 : vector<4x256xf32>
    %c8_i32 = arith.constant 8 : i32
    %26 = tpu.dynamic_rotate %25 by %c8_i32 dim 1 : vector<4x256xf32>, i32 -> vector<4x256xf32>
    %c3 = arith.constant 3 : index
    %c0_11 = arith.constant 0 : index
    %27 = vector.load %arg2[%c3, %c0_11] : memref<8x256xf32, #tpu.memory_space<vmem>>, vector<1x256xf32>
    %28 = vector.broadcast %27 : vector<1x256xf32> to vector<4x256xf32>
    %29 = arith.mulf %26, %28 : vector<4x256xf32>
    %30 = arith.addf %25, %29 : vector<4x256xf32>
    %c16_i32 = arith.constant 16 : i32
    %31 = tpu.dynamic_rotate %30 by %c16_i32 dim 1 : vector<4x256xf32>, i32 -> vector<4x256xf32>
    %c4 = arith.constant 4 : index
    %c0_12 = arith.constant 0 : index
    %32 = vector.load %arg2[%c4, %c0_12] : memref<8x256xf32, #tpu.memory_space<vmem>>, vector<1x256xf32>
    %33 = vector.broadcast %32 : vector<1x256xf32> to vector<4x256xf32>
    %34 = arith.mulf %31, %33 : vector<4x256xf32>
    %35 = arith.addf %30, %34 : vector<4x256xf32>
    %c32_i32 = arith.constant 32 : i32
    %36 = tpu.dynamic_rotate %35 by %c32_i32 dim 1 : vector<4x256xf32>, i32 -> vector<4x256xf32>
    %c5 = arith.constant 5 : index
    %c0_13 = arith.constant 0 : index
    %37 = vector.load %arg2[%c5, %c0_13] : memref<8x256xf32, #tpu.memory_space<vmem>>, vector<1x256xf32>
    %38 = vector.broadcast %37 : vector<1x256xf32> to vector<4x256xf32>
    %39 = arith.mulf %36, %38 : vector<4x256xf32>
    %40 = arith.addf %35, %39 : vector<4x256xf32>
    %c64_i32 = arith.constant 64 : i32
    %41 = tpu.dynamic_rotate %40 by %c64_i32 dim 1 : vector<4x256xf32>, i32 -> vector<4x256xf32>
    %c6 = arith.constant 6 : index
    %c0_14 = arith.constant 0 : index
    %42 = vector.load %arg2[%c6, %c0_14] : memref<8x256xf32, #tpu.memory_space<vmem>>, vector<1x256xf32>
    %43 = vector.broadcast %42 : vector<1x256xf32> to vector<4x256xf32>
    %44 = arith.mulf %41, %43 : vector<4x256xf32>
    %45 = arith.addf %40, %44 : vector<4x256xf32>
    %c128_i32 = arith.constant 128 : i32
    %46 = tpu.dynamic_rotate %45 by %c128_i32 dim 1 : vector<4x256xf32>, i32 -> vector<4x256xf32>
    %c7 = arith.constant 7 : index
    %c0_15 = arith.constant 0 : index
    %47 = vector.load %arg2[%c7, %c0_15] : memref<8x256xf32, #tpu.memory_space<vmem>>, vector<1x256xf32>
    %48 = vector.broadcast %47 : vector<1x256xf32> to vector<4x256xf32>
    %49 = arith.mulf %46, %48 : vector<4x256xf32>
    %50 = arith.addf %45, %49 : vector<4x256xf32>
    %c0_16 = arith.constant 0 : index
    %c0_17 = arith.constant 0 : index
    %51 = vector.load %arg6[%c0_16, %c0_17] : memref<4x1xf32, #tpu.memory_space<vmem>>, vector<4x1xf32>
    %52 = vector.broadcast %51 : vector<4x1xf32> to vector<4x256xf32>
    %53 = arith.addf %50, %52 : vector<4x256xf32>
    %54 = tpu.iota {dimensions = array<i32: 1>} : vector<4x256xi32>
    %c256_i32 = arith.constant 256 : i32
    %55 = arith.muli %arg0, %c256_i32 : i32
    %56 = vector.broadcast %55 : i32 to vector<4x256xi32>
    %57 = arith.addi %54, %56 : vector<4x256xi32>
    %58 = arith.sitofp %57 : vector<4x256xi32> to vector<4x256xf32>
    %cst_18 = arith.constant 1.000000e+00 : f32
    %59 = vector.broadcast %cst_18 : f32 to vector<4x256xf32>
    %60 = arith.addf %58, %59 : vector<4x256xf32>
    %61 = vector.broadcast %3 : vector<4x1xf32> to vector<4x256xf32>
    %62 = arith.subf %61, %53 : vector<4x256xf32>
    %63 = arith.subf %60, %53 : vector<4x256xf32>
    %64 = vector.broadcast %3 : vector<4x1xf32> to vector<4x256xf32>
    %65 = arith.addf %64, %63 : vector<4x256xf32>
    %66 = tpu.reciprocal %65 : vector<4x256xf32> -> vector<4x256xf32>
    %67 = arith.mulf %62, %66 : vector<4x256xf32>
    %cst_19 = arith.constant 1.000000e+00 : f32
    %68 = vector.broadcast %cst_19 : f32 to vector<4x256xf32>
    %69 = arith.subf %68, %67 : vector<4x256xf32>
    %c1_i32_20 = arith.constant 1 : i32
    %70 = tpu.dynamic_rotate %69 by %c1_i32_20 dim 1 : vector<4x256xf32>, i32 -> vector<4x256xf32>
    %c0_i32_21 = arith.constant 0 : i32
    %71 = vector.broadcast %c0_i32_21 : i32 to vector<4x256xi32>
    %72 = arith.cmpi eq, %54, %71 : vector<4x256xi32>
    %c0_22 = arith.constant 0 : index
    %c0_23 = arith.constant 0 : index
    %73 = vector.load %arg7[%c0_22, %c0_23] : memref<4x1xf32, #tpu.memory_space<vmem>>, vector<4x1xf32>
    %74 = vector.shape_cast %73 : vector<4x1xf32> to vector<4x1xf32>
    %75 = vector.broadcast %74 : vector<4x1xf32> to vector<4x256xf32>
    %76 = arith.select %72, %75, %70 : vector<4x256xi1>, vector<4x256xf32>
    %77 = arith.subf %69, %76 : vector<4x256xf32>
    %c0_24 = arith.constant 0 : index
    %c0_25 = arith.constant 0 : index
    %78 = vector.load %arg8[%c0_24, %c0_25] : memref<4x1xf32, #tpu.memory_space<vmem>>, vector<4x1xf32>
    %79 = arith.mulf %10, %77 : vector<4x256xf32>
    %cst_26 = arith.constant dense<0.000000e+00> : vector<4xf32>
    %80 = vector.multi_reduction <add>, %79, %cst_26 [1] : vector<4x256xf32> to vector<4xf32>
    %81 = vector.shape_cast %80 : vector<4xf32> to vector<4x1xf32>
    %82 = arith.addf %78, %81 : vector<4x1xf32>
    %c0_27 = arith.constant 0 : index
    %c0_28 = arith.constant 0 : index
    %83 = vector.load %arg8[%c0_27, %c0_28] : memref<4x1xf32, #tpu.memory_space<vmem>>, vector<4x1xf32>
    tpu.vector_store %arg8[%c0_27, %c0_28], %82 {strides = array<i32>} : memref<4x1xf32, #tpu.memory_space<vmem>>, vector<4x1xf32>,
    %c0_29 = arith.constant 0 : index
    %c0_30 = arith.constant 0 : index
    %84 = vector.load %arg6[%c0_29, %c0_30] : memref<4x1xf32, #tpu.memory_space<vmem>>, vector<4x1xf32>
    %cst_31 = arith.constant dense<0.000000e+00> : vector<4xf32>
    %85 = vector.multi_reduction <add>, %5, %cst_31 [1] : vector<4x256xf32> to vector<4xf32>
    %86 = vector.shape_cast %85 : vector<4xf32> to vector<4x1xf32>
    %87 = arith.addf %84, %86 : vector<4x1xf32>
    %c0_32 = arith.constant 0 : index
    %c0_33 = arith.constant 0 : index
    %88 = vector.load %arg6[%c0_32, %c0_33] : memref<4x1xf32, #tpu.memory_space<vmem>>, vector<4x1xf32>
    tpu.vector_store %arg6[%c0_32, %c0_33], %87 {strides = array<i32>} : memref<4x1xf32, #tpu.memory_space<vmem>>, vector<4x1xf32>,
    %c1_i32_34 = arith.constant 1 : i32
    %89 = arith.addi %arg0, %c1_i32_34 : i32
    %c256_i32_35 = arith.constant 256 : i32
    %90 = arith.muli %89, %c256_i32_35 : i32
    %91 = arith.sitofp %90 : i32 to f32
    %92 = vector.broadcast %91 : f32 to vector<4x1xf32>
    %93 = arith.subf %92, %87 : vector<4x1xf32>
    %94 = arith.addf %3, %93 : vector<4x1xf32>
    %95 = arith.subf %3, %87 : vector<4x1xf32>
    %96 = tpu.reciprocal %94 : vector<4x1xf32> -> vector<4x1xf32>
    %97 = arith.mulf %95, %96 : vector<4x1xf32>
    %cst_36 = arith.constant 1.000000e+00 : f32
    %98 = vector.broadcast %cst_36 : f32 to vector<4x1xf32>
    %99 = arith.subf %98, %97 : vector<4x1xf32>
    %c0_37 = arith.constant 0 : index
    %c0_38 = arith.constant 0 : index
    %100 = vector.load %arg7[%c0_37, %c0_38] : memref<4x1xf32, #tpu.memory_space<vmem>>, vector<4x1xf32>
    tpu.vector_store %arg7[%c0_37, %c0_38], %99 {strides = array<i32>} : memref<4x1xf32, #tpu.memory_space<vmem>>, vector<4x1xf32>,
    %c1_i32_39 = arith.constant 1 : i32
    %101 = arith.cmpi eq, %arg0, %c1_i32_39 : i32
    %102 = arith.extui %101 : i1 to i32
    %c0_i32_40 = arith.constant 0 : i32
    %103 = arith.cmpi ne, %102, %c0_i32_40 : i32
    scf.if %103 {
      %cst_41 = arith.constant 0.000000e+00 : f32
      %104 = vector.broadcast %cst_41 : f32 to vector<4x1xf32>
      %105 = arith.cmpf ogt, %3, %104 : vector<4x1xf32>
      %106 = arith.extui %105 : vector<4x1xi1> to vector<4x1xi32>
      %107 = arith.sitofp %106 : vector<4x1xi32> to vector<4x1xf32>
      %c0_42 = arith.constant 0 : index
      %c0_43 = arith.constant 0 : index
      %108 = vector.load %arg8[%c0_42, %c0_43] : memref<4x1xf32, #tpu.memory_space<vmem>>, vector<4x1xf32>
      %109 = arith.mulf %108, %107 : vector<4x1xf32>
      %cst_44 = arith.constant dense<0.000000e+00> : vector<1xf32>
      %110 = vector.multi_reduction <add>, %109, %cst_44 [0] : vector<4x1xf32> to vector<1xf32>
      %111 = vector.shape_cast %110 : vector<1xf32> to vector<1x1xf32>
      %cst_45 = arith.constant dense<0.000000e+00> : vector<1xf32>
      %112 = vector.multi_reduction <add>, %107, %cst_45 [0] : vector<4x1xf32> to vector<1xf32>
      %113 = vector.shape_cast %112 : vector<1xf32> to vector<1x1xf32>
      %cst_46 = arith.constant 1.000000e+00 : f32
      %114 = vector.broadcast %cst_46 : f32 to vector<1x1xf32>
      %115 = arith.maximumf %113, %114 : vector<1x1xf32>
      %116 = arith.divf %111, %115 : vector<1x1xf32>
      %c0_47 = arith.constant 0 : index
      %c0_48 = arith.constant 0 : index
      %117 = vector.load %arg5[%c0_47, %c0_48] : memref<1x1xf32, #tpu.memory_space<vmem>>, vector<1x1xf32>
      tpu.vector_store %arg5[%c0_47, %c0_48], %116 {strides = array<i32>} : memref<1x1xf32, #tpu.memory_space<vmem>>, vector<1x1xf32>,
    } else {
    }
    return
  }
  func.func @transform_0(%arg0: i32) -> (i32, i32) {
    %c0_i32 = arith.constant 0 : i32
    %c0_i32_0 = arith.constant 0 : i32
    %c0_i32_1 = arith.constant 0 : i32
    return %c0_i32, %c0_i32_0 : i32, i32
  }
  func.func @transform_1(%arg0: i32) -> (i32, i32) {
    %c0_i32 = arith.constant 0 : i32
    %c0_i32_0 = arith.constant 0 : i32
    %c0_i32_1 = arith.constant 0 : i32
    return %c0_i32, %c0_i32_0 : i32, i32
  }
  func.func @transform_2(%arg0: i32) -> (i32, i32) {
    %c0_i32 = arith.constant 0 : i32
    %c0_i32_0 = arith.constant 0 : i32
    return %c0_i32, %arg0 : i32, i32
  }
  func.func @transform_3(%arg0: i32) -> (i32, i32) {
    %c0_i32 = arith.constant 0 : i32
    %c0_i32_0 = arith.constant 0 : i32
    return %c0_i32, %arg0 : i32, i32
  }
  func.func @transform_4(%arg0: i32) -> (i32, i32) {
    %c0_i32 = arith.constant 0 : i32
    %c0_i32_0 = arith.constant 0 : i32
    %c0_i32_1 = arith.constant 0 : i32
    return %c0_i32, %c0_i32_0 : i32, i32
  }
}

</mosaic_0001>

<llo_original>
// kernel: lovasz_softmax_loss.2
$region0: #{lovasz_softmax_loss.2}
  #allocation0 [shape = 'u32[]', space=smem, size = 0x4, offset = 0x4, fixed_abs, tag = 'smem constant byte address 0x4 - core index']
  #allocation1 [shape = 'u32[144,128]{1,0:T(1,128)}', space=vmem, size = 0x12000, scoped, tag = 'internal scratch']
  %s0 = inlined_call_operand.vmem [shape: f32[2,4,256], index: 0, kind: input, shape index: {}]
  %s1 = inlined_call_operand.vmem [shape: s32[2,1,256], index: 1, kind: input, shape index: {}]
  %s2 = inlined_call_operand.vmem [shape: f32[4,512], index: 2, kind: output, shape index: {0}]
  %s3 = inlined_call_operand.vmem [shape: bf16[4,512], index: 3, kind: output, shape index: {1}]
  %s4 = inlined_call_operand.vmem [shape: f32[4,512], index: 4, kind: output, shape index: {2}]
  %5 = xla_tuple %s2, %s3, %s4
  %s6 = sld [smem:[#allocation0]]
  $region57: #{lovasz_softmax_loss.2} parent=0
    _
  %s8 = ssub.s32 1, %s6
  %s9 = scalar_select 0, %s8, %s6
  loop: start=0, step=1, limit=6
  $region2: #{lovasz_softmax_loss.2} parent=0 // loop_pre_header
    _
  $region3: #{lovasz_softmax_loss.2} parent=0 // loop_header
    %s11 = sphi 0, %s15
    %p12 = scmp.ge.s32.totalorder %s11, 6
    %s18 = sphi 0, %s30
    %s19 = sphi 0, %s26
    %s20 = sphi 0, %s18
    %s21 = sphi 0, %s19
    %s22 = sphi 0, %s20
    %s23 = sphi 0, %s21
    %s35 = sphi 0, %s37
    %s38 = sphi 0, %s35
    %s39 = sphi 0, %s38
    %s55 = sphi 0, %s39
    %s63 = sphi 0, %s65
    %s66 = sphi 0, %s63
    %s67 = sphi 0, %s66
    %s83 = sphi 0, %s67
    %s93 = sphi 0, %s95
    %s96 = sphi 0, %s93
    %s97 = sphi 0, %s96
    %s113 = sphi 0, %s97
    %s123 = sphi 0, %s125
    %s126 = sphi 0, %s123
    %s127 = sphi 0, %s126
    %s143 = sphi 0, %s127
    %s153 = sphi 0, %s155
    %s156 = sphi 0, %s153
    %s157 = sphi 0, %s156
    %s173 = sphi 0, %s157
  $region4: #{lovasz_softmax_loss.2} parent=0 // loop_header_branch
    %14 = sbr.rel (%p12) target = $region8
  $region5: #{lovasz_softmax_loss.2} parent=0 // loop_body
    %s16 = ssub.s32 %s11, 1
    %s17 = ssub.s32 %s11, 2
    %s24 = sadd.s32 1, %s19
    %p25 = scmp.ge.s32.totalorder %s24, 2
    %s26 = scalar_select %p25, 0, %s24
    %s27 = sadd.s32 1, %s18
    %s28 = scalar_select %p25, %s27, %s18
    %p29 = scmp.ge.s32.totalorder %s28, 2
    %s30 = scalar_select %p29, 0, %s28
    %s31 = ssub.s32 %s18, %s30
    %s32 = ssub.s32 %s19, %s26
    %s33 = sor.u32 %s31, %s32
    %p34 = scmp.eq.s32.totalorder %s33, 0
    %s36 = sadd.s32 %s35, 1
    %s37 = scalar_select %p34, %s35, %s36
    %p40 = pneg %p34
    %p41 = scmp.eq.s32.totalorder %s11, 3
    %p42 = por %p40, %p41
    %p43 = scmp.ne.s32.totalorder %s35, %s38
    %p44 = scmp.eq.s32.totalorder %s11, 0
    %p45 = por %p43, %p44
    %p46 = scmp.ne.s32.totalorder %s35, %s38
    %p47 = scmp.eq.s32.totalorder %s16, 3
    %p48 = por %p46, %p47
    %p49 = scmp.ne.s32.totalorder %s38, %s39
    %p50 = scmp.eq.s32.totalorder %s16, 0
    %p51 = por %p49, %p50
    %p52 = scmp.ne.s32.totalorder %s38, %s39
    %p53 = scmp.eq.s32.totalorder %s17, 3
    %p54 = por %p52, %p53
    %p56 = scmp.ne.s32.totalorder %s39, %s55
    %p57 = scmp.eq.s32.totalorder %s17, 0
    %p58 = por %p56, %p57
    %s59 = ssub.s32 %s18, %s30
    %s60 = ssub.s32 %s19, %s26
    %s61 = sor.u32 %s59, %s60
    %p62 = scmp.eq.s32.totalorder %s61, 0
    %s64 = sadd.s32 %s63, 1
    %s65 = scalar_select %p62, %s63, %s64
    %p68 = pneg %p62
    %p69 = scmp.eq.s32.totalorder %s11, 3
    %p70 = por %p68, %p69
    %p71 = scmp.ne.s32.totalorder %s63, %s66
    %p72 = scmp.eq.s32.totalorder %s11, 0
    %p73 = por %p71, %p72
    %p74 = scmp.ne.s32.totalorder %s63, %s66
    %p75 = scmp.eq.s32.totalorder %s16, 3
    %p76 = por %p74, %p75
    %p77 = scmp.ne.s32.totalorder %s66, %s67
    %p78 = scmp.eq.s32.totalorder %s16, 0
    %p79 = por %p77, %p78
    %p80 = scmp.ne.s32.totalorder %s66, %s67
    %p81 = scmp.eq.s32.totalorder %s17, 3
    %p82 = por %p80, %p81
    %p84 = scmp.ne.s32.totalorder %s67, %s83
    %p85 = scmp.eq.s32.totalorder %s17, 0
    %p86 = por %p84, %p85
    %s87 = smul.u32 %s18, 2
    %s88 = sadd.s32 %s87, %s19
    %s89 = smul.u32 %s30, 2
    %s90 = sadd.s32 %s89, %s26
    %s91 = ssub.s32 %s88, %s90
    %p92 = scmp.eq.s32.totalorder %s91, 0
    %s94 = sadd.s32 %s93, 1
    %s95 = scalar_select %p92, %s93, %s94
    %p98 = pneg %p92
    %p99 = scmp.eq.s32.totalorder %s11, 3
    %p100 = por %p98, %p99
    %p101 = scmp.ne.s32.totalorder %s93, %s96
    %p102 = scmp.eq.s32.totalorder %s11, 0
    %p103 = por %p101, %p102
    %p104 = scmp.ne.s32.totalorder %s93, %s96
    %p105 = scmp.eq.s32.totalorder %s16, 3
    %p106 = por %p104, %p105
    %p107 = scmp.ne.s32.totalorder %s96, %s97
    %p108 = scmp.eq.s32.totalorder %s16, 0
    %p109 = por %p107, %p108
    %p110 = scmp.ne.s32.totalorder %s96, %s97
    %p111 = scmp.eq.s32.totalorder %s17, 3
    %p112 = por %p110, %p111
    %p114 = scmp.ne.s32.totalorder %s97, %s113
    %p115 = scmp.eq.s32.totalorder %s17, 0
    %p116 = por %p114, %p115
    %s117 = smul.u32 %s18, 2
    %s118 = sadd.s32 %s117, %s19
    %s119 = smul.u32 %s30, 2
    %s120 = sadd.s32 %s119, %s26
    %s121 = ssub.s32 %s118, %s120
    %p122 = scmp.eq.s32.totalorder %s121, 0
    %s124 = sadd.s32 %s123, 1
    %s125 = scalar_select %p122, %s123, %s124
    %p128 = pneg %p122
    %p129 = scmp.eq.s32.totalorder %s11, 3
    %p130 = por %p128, %p129
    %p131 = scmp.ne.s32.totalorder %s123, %s126
    %p132 = scmp.eq.s32.totalorder %s11, 0
    %p133 = por %p131, %p132
    %p134 = scmp.ne.s32.totalorder %s123, %s126
    %p135 = scmp.eq.s32.totalorder %s16, 3
    %p136 = por %p134, %p135
    %p137 = scmp.ne.s32.totalorder %s126, %s127
    %p138 = scmp.eq.s32.totalorder %s16, 0
    %p139 = por %p137, %p138
    %p140 = scmp.ne.s32.totalorder %s126, %s127
    %p141 = scmp.eq.s32.totalorder %s17, 3
    %p142 = por %p140, %p141
    %p144 = scmp.ne.s32.totalorder %s127, %s143
    %p145 = scmp.eq.s32.totalorder %s17, 0
    %p146 = por %p144, %p145
    %s147 = smul.u32 %s18, 2
    %s148 = sadd.s32 %s147, %s19
    %s149 = smul.u32 %s30, 2
    %s150 = sadd.s32 %s149, %s26
    %s151 = ssub.s32 %s148, %s150
    %p152 = scmp.eq.s32.totalorder %s151, 0
    %s154 = sadd.s32 %s153, 1
    %s155 = scalar_select %p152, %s153, %s154
    %p158 = pneg %p152
    %p159 = scmp.eq.s32.totalorder %s11, 3
    %p160 = por %p158, %p159
    %p161 = scmp.ne.s32.totalorder %s153, %s156
    %p162 = scmp.eq.s32.totalorder %s11, 0
    %p163 = por %p161, %p162
    %p164 = scmp.ne.s32.totalorder %s153, %s156
    %p165 = scmp.eq.s32.totalorder %s16, 3
    %p166 = por %p164, %p165
    %p167 = scmp.ne.s32.totalorder %s156, %s157
    %p168 = scmp.eq.s32.totalorder %s16, 0
    %p169 = por %p167, %p168
    %p170 = scmp.ne.s32.totalorder %s156, %s157
    %p171 = scmp.eq.s32.totalorder %s17, 3
    %p172 = por %p170, %p171
    %p174 = scmp.ne.s32.totalorder %s157, %s173
    %p175 = scmp.eq.s32.totalorder %s17, 0
    %p176 = por %p174, %p175
    %p177 = scmp.le.s32.totalorder 1, %s11
    %p178 = scmp.lt.s32.totalorder %s11, 5
    %p179 = pnand %p177, %p178
    %p180 = pneg %p179
    // Predicated region
    $region9: #{lovasz_softmax_loss.2} parent=5 // pred_check
      _
    $region10: #{lovasz_softmax_loss.2} parent=5 // pred_check_branch
      %182 = sbr.rel (%p179) target = $region12
    $region11: #{lovasz_softmax_loss.2} parent=5 // pred_region
      %s183 = ssub.s32 %s11, 1
    $region12: #{lovasz_softmax_loss.2} parent=5 // pred_fallthru
      _
    %p184 = scmp.lt.s32.totalorder %s11, 4
    // Predicated region
    $region13: #{lovasz_softmax_loss.2} parent=5 // pred_check
      %p185 = pneg %p184
    $region14: #{lovasz_softmax_loss.2} parent=5 // pred_check_branch
      %187 = sbr.rel (%p185) target = $region16
    $region15: #{lovasz_softmax_loss.2} parent=5 // pred_region
      // Predicated region
      $region17: #{lovasz_softmax_loss.2} parent=15 // pred_check
        %p188 = pneg %p45
      $region18: #{lovasz_softmax_loss.2} parent=15 // pred_check_branch
        %190 = sbr.rel (%p188) target = $region20
      $region19: #{lovasz_softmax_loss.2} parent=15 // pred_region
        %p191 = scmp.lt.s32.totalorder %s18, 1
        %s192 = scalar_select %p191, %s18, 1
        %p193 = scmp.lt.s32.totalorder %s19, 1
        %s194 = scalar_select %p193, %s19, 1
        %s195 = smul.addr %s192, 2
        %s196 = sadd.s32 %s194, %s195
        %s197 = smul.addr %s196, 4
        %s198 = scalar_lea.vmem %s0, %s197
      $region20: #{lovasz_softmax_loss.2} parent=15 // pred_fallthru
        _
      // Predicated region
      $region21: #{lovasz_softmax_loss.2} parent=15 // pred_check
        %p199 = pneg %p73
      $region22: #{lovasz_softmax_loss.2} parent=15 // pred_check_branch
        %201 = sbr.rel (%p199) target = $region24
      $region23: #{lovasz_softmax_loss.2} parent=15 // pred_region
        %p202 = scmp.lt.s32.totalorder %s18, 1
        %s203 = scalar_select %p202, %s18, 1
        %p204 = scmp.lt.s32.totalorder %s19, 1
        %s205 = scalar_select %p204, %s19, 1
        %s206 = smul.addr %s203, 2
        %s207 = sadd.s32 %s205, %s206
        %s208 = scalar_lea.vmem %s1, %s207
      $region24: #{lovasz_softmax_loss.2} parent=15 // pred_fallthru
        _
    $region16: #{lovasz_softmax_loss.2} parent=5 // pred_fallthru
      _
    %p209 = scmp.le.s32.totalorder 1, %s11
    %p210 = scmp.lt.s32.totalorder %s11, 5
    %p211 = pnand %p209, %p210
    %p212 = pneg %p211
    // Predicated region
    $region25: #{lovasz_softmax_loss.2} parent=5 // pred_check
      _
    $region26: #{lovasz_softmax_loss.2} parent=5 // pred_check_branch
      %214 = sbr.rel (%p211) target = $region28
    $region27: #{lovasz_softmax_loss.2} parent=5 // pred_region
      %s215 = ssub.s32 %s11, 1
      %p216 = scmp.lt.s32.totalorder %s20, 1
      %s217 = scalar_select %p216, %s20, 1
      %p218 = scmp.lt.s32.totalorder %s21, 1
      %s219 = scalar_select %p218, %s21, 1
      %s220 = smul.addr %s217, 2
      %s221 = sadd.s32 %s219, %s220
      %s222 = smul.addr %s221, 4
      %s223 = scalar_lea.vmem %s0, %s222
      %p224 = pneg %p51
      %p225 = pneg %p48
      %p226 = scmp.lt.s32.totalorder %s20, 1
      %s227 = scalar_select %p226, %s20, 1
      %p228 = scmp.lt.s32.totalorder %s21, 1
      %s229 = scalar_select %p228, %s21, 1
      %s230 = smul.addr %s227, 2
      %s231 = sadd.s32 %s229, %s230
      %s232 = scalar_lea.vmem %s1, %s231
      %p233 = pneg %p79
      %p234 = pneg %p76
      %p235 = pneg %p109
      %p236 = pneg %p106
      %s237 = smul.u32 %s20, 2
      %s238 = sadd.s32 %s237, %s21
      %p239 = scmp.lt.s32.totalorder %s238, 3
      %s240 = scalar_select %p239, %s238, 3
      %s241 = smul.addr %s240, 4
      %s242 = scalar_lea.vmem %s2, %s241
      %p243 = pneg %p139
      %p244 = pneg %p136
      %s245 = smul.u32 %s20, 2
      %s246 = sadd.s32 %s245, %s21
      %p247 = scmp.lt.s32.totalorder %s246, 3
      %s248 = scalar_select %p247, %s246, 3
      %s249 = smul.addr %s248, 2
      %s250 = scalar_lea.vmem %s3, %s249
      %p251 = pneg %p169
      %p252 = pneg %p166
      %s253 = smul.u32 %s20, 2
      %s254 = sadd.s32 %s253, %s21
      %p255 = scmp.lt.s32.totalorder %s254, 3
      %s256 = scalar_select %p255, %s254, 3
      %s257 = smul.addr %s256, 4
      %s258 = scalar_lea.vmem %s4, %s257
      %p259 = scmp.lt.s32.totalorder %s20, 1
      %s260 = scalar_select %p259, %s20, 1
      %p261 = scmp.lt.s32.totalorder %s21, 1
      %s262 = scalar_select %p261, %s21, 1
      %s263 = smul.addr %s260, 2
      %s264 = sadd.s32 %s262, %s263
      %s265 = smul.addr %s264, 4
      %s266 = scalar_lea.vmem %s0, %s265
      %p267 = scmp.lt.s32.totalorder %s20, 1
      %s268 = scalar_select %p267, %s20, 1
      %p269 = scmp.lt.s32.totalorder %s21, 1
      %s270 = scalar_select %p269, %s21, 1
      %s271 = smul.addr %s268, 2
      %s272 = sadd.s32 %s270, %s271
      %s273 = scalar_lea.vmem %s1, %s272
      %s274 = smul.u32 %s20, 2
      %s275 = sadd.s32 %s274, %s21
      %p276 = scmp.lt.s32.totalorder %s275, 3
      %s277 = scalar_select %p276, %s275, 3
      %s278 = smul.addr %s277, 4
      %s279 = scalar_lea.vmem %s2, %s278
      %s280 = smul.u32 %s20, 2
      %s281 = sadd.s32 %s280, %s21
      %s282 = smul.u32 %s20, 2
      %s283 = sadd.s32 %s282, %s21
      %p284 = scmp.lt.s32.totalorder %s283, 3
      %s285 = scalar_select %p284, %s283, 3
      %s286 = smul.addr %s285, 2
      %s287 = scalar_lea.vmem %s3, %s286
      %s288 = smul.u32 %s20, 2
      %s289 = sadd.s32 %s288, %s21
      %s290 = smul.u32 %s20, 2
      %s291 = sadd.s32 %s290, %s21
      %p292 = scmp.lt.s32.totalorder %s291, 3
      %s293 = scalar_select %p292, %s291, 3
      %s294 = smul.addr %s293, 4
      %s295 = scalar_lea.vmem %s4, %s294
      %s296 = smul.u32 %s20, 2
      %s297 = sadd.s32 %s296, %s21
      %v298 = vld [vmem:[%s266] sm:$0xf]
      %v299 = vld [vmem:[%s273] sm:$0x1]
      %vm300 = vcmask 1043456
      %v301 = vsel %vm300, %v298, -inf
      %v302 = vrot.slane %v301, 4
      %v303 = vmax.f32 %v301, %v302
      %v304 = vrot.slane %v303, 2
      %v305 = vmax.f32 %v303, %v304
      %v306 = vrot.slane %v305, 1
      %v307 = vmax.f32 %v305, %v306
      %v308 = vsub.f32 %v298, %v307
      %v309 = vmul.f32 %v308, 1.442695
      %v310 = vpow.pop %v309
      %v311 = vsel %vm300, %v310, 0.0
      %v312 = vrot.slane %v311, 4
      %v313 = vadd.f32 %v311, %v312
      %v314 = vrot.slane %v313, 2
      %v315 = vadd.f32 %v313, %v314
      %v316 = vrot.slane %v315, 1
      %v317 = vadd.f32 %v315, %v316
      %v318 = vrcp.pop %v317
      %v319 = vmul.f32 %v310, %v318
      %v320 = vlaneseq
      %v321 = vshrl.u32 %v320, 7
      %v322 = vlaneseq
      %v323 = vshrl.u32 %v322, 7
      %v324 = vsub.s32 0, %v323
      %v325 = vrot.slane %v299, %v324
      %vm326 = vcmp.ne.s32.totalorder %v325, 255
      %vm327 = vcmp.eq.s32.totalorder %v325, %v321
      %vm328 = vmand %vm327, %vm326
      %v329 = vsel %vm328, 1, 0
      %v330 = vcvt.s32.f32 %v329
      %v331 = vsub.f32 %v330, %v319
      %v332 = vand.u32 2147483647, %v331
      %v333 = vsub.f32 0.0, %v332
      %v334 = vsel %vm326, %v333, 1.0
      %335 = vst [vmem:[%s279] sm:$0xf] %v334
      %v336 = vpack.c.bf16 %v330, %v330
      %337 = vst [vmem:[%s287] sm:$0x3] %v336
      %v338 = vsel %vm300, %v330, 0.0
      %339 = vadd.xlane.f32.xlu0 %v338
      %v340 = vpop.xlane.xlu0 %339
      %341 = vst [vmem:[%s295] sm:$0xf] %v340
      %s342 = smul.u32 %s20, 2
      %s343 = sadd.s32 %s342, %s21
      %p344 = scmp.lt.s32.totalorder %s343, 3
      %s345 = scalar_select %p344, %s343, 3
      %s346 = smul.addr %s345, 4
      %s347 = scalar_lea.vmem %s2, %s346
      %s348 = smul.u32 %s20, 2
      %s349 = sadd.s32 %s348, %s21
      %p350 = scmp.lt.s32.totalorder %s349, 3
      %s351 = scalar_select %p350, %s349, 3
      %s352 = smul.addr %s351, 2
      %s353 = scalar_lea.vmem %s3, %s352
      %s354 = smul.u32 %s20, 2
      %s355 = sadd.s32 %s354, %s21
      %p356 = scmp.lt.s32.totalorder %s355, 3
      %s357 = scalar_select %p356, %s355, 3
      %s358 = smul.addr %s357, 4
      %s359 = scalar_lea.vmem %s4, %s358
      // Predicated region
      $region29: #{lovasz_softmax_loss.2} parent=27 // pred_check
        %p360 = pneg %p106
      $region30: #{lovasz_softmax_loss.2} parent=27 // pred_check_branch
        %362 = sbr.rel (%p360) target = $region32
      $region31: #{lovasz_softmax_loss.2} parent=27 // pred_region
        %s363 = smul.u32 %s20, 2
        %s364 = sadd.s32 %s363, %s21
      $region32: #{lovasz_softmax_loss.2} parent=27 // pred_fallthru
        _
      // Predicated region
      $region33: #{lovasz_softmax_loss.2} parent=27 // pred_check
        %p365 = pneg %p136
      $region34: #{lovasz_softmax_loss.2} parent=27 // pred_check_branch
        %367 = sbr.rel (%p365) target = $region36
      $region35: #{lovasz_softmax_loss.2} parent=27 // pred_region
        %s368 = smul.u32 %s20, 2
        %s369 = sadd.s32 %s368, %s21
      $region36: #{lovasz_softmax_loss.2} parent=27 // pred_fallthru
        _
      // Predicated region
      $region37: #{lovasz_softmax_loss.2} parent=27 // pred_check
        %p370 = pneg %p166
      $region38: #{lovasz_softmax_loss.2} parent=27 // pred_check_branch
        %372 = sbr.rel (%p370) target = $region40
      $region39: #{lovasz_softmax_loss.2} parent=27 // pred_region
        %s373 = smul.u32 %s20, 2
        %s374 = sadd.s32 %s373, %s21
      $region40: #{lovasz_softmax_loss.2} parent=27 // pred_fallthru
        _
    $region28: #{lovasz_softmax_loss.2} parent=5 // pred_fallthru
      _
    %p375 = scmp.le.s32.totalorder 2, %s11
    // Predicated region
    $region41: #{lovasz_softmax_loss.2} parent=5 // pred_check
      %p376 = pneg %p375
    $region42: #{lovasz_softmax_loss.2} parent=5 // pred_check_branch
      %378 = sbr.rel (%p376) target = $region44
    $region43: #{lovasz_softmax_loss.2} parent=5 // pred_region
      %s379 = ssub.s32 %s11, 2
      // Predicated region
      $region45: #{lovasz_softmax_loss.2} parent=43 // pred_check
        %p380 = pneg %p112
      $region46: #{lovasz_softmax_loss.2} parent=43 // pred_check_branch
        %382 = sbr.rel (%p380) target = $region48
      $region47: #{lovasz_softmax_loss.2} parent=43 // pred_region
        %s383 = smul.u32 %s22, 2
        %s384 = sadd.s32 %s383, %s23
        %p385 = scmp.lt.s32.totalorder %s384, 3
        %s386 = scalar_select %p385, %s384, 3
        %s387 = smul.addr %s386, 4
        %s388 = scalar_lea.vmem %s2, %s387
      $region48: #{lovasz_softmax_loss.2} parent=43 // pred_fallthru
        _
      // Predicated region
      $region49: #{lovasz_softmax_loss.2} parent=43 // pred_check
        %p389 = pneg %p142
      $region50: #{lovasz_softmax_loss.2} parent=43 // pred_check_branch
        %391 = sbr.rel (%p389) target = $region52
      $region51: #{lovasz_softmax_loss.2} parent=43 // pred_region
        %s392 = smul.u32 %s22, 2
        %s393 = sadd.s32 %s392, %s23
        %p394 = scmp.lt.s32.totalorder %s393, 3
        %s395 = scalar_select %p394, %s393, 3
        %s396 = smul.addr %s395, 2
        %s397 = scalar_lea.vmem %s3, %s396
      $region52: #{lovasz_softmax_loss.2} parent=43 // pred_fallthru
        _
      // Predicated region
      $region53: #{lovasz_softmax_loss.2} parent=43 // pred_check
        %p398 = pneg %p172
      $region54: #{lovasz_softmax_loss.2} parent=43 // pred_check_branch
        %400 = sbr.rel (%p398) target = $region56
      $region55: #{lovasz_softmax_loss.2} parent=43 // pred_region
        %s401 = smul.u32 %s22, 2
        %s402 = sadd.s32 %s401, %s23
        %p403 = scmp.lt.s32.totalorder %s402, 3
        %s404 = scalar_select %p403, %s402, 3
        %s405 = smul.addr %s404, 4
        %s406 = scalar_lea.vmem %s4, %s405
      $region56: #{lovasz_softmax_loss.2} parent=43 // pred_fallthru
        _
    $region44: #{lovasz_softmax_loss.2} parent=5 // pred_fallthru
      _
  $region6: #{lovasz_softmax_loss.2} parent=0 // loop_footer
    %s15 = sadd.s32 1, %s11
  $region7: #{lovasz_softmax_loss.2} parent=0 // loop_footer_branch
    %10 = sbr.rel target = $region3
  $region8: #{lovasz_softmax_loss.2} parent=0 // loop_exit
    _

// kernel: lovasz_softmax_loss.3
$region0: #{lovasz_softmax_loss.3}
  #allocation0 [shape = 'u32[]', space=smem, size = 0x4, offset = 0x4, fixed_abs, tag = 'smem constant byte address 0x4 - core index']
  #allocation1 [shape = 'u32[144,128]{1,0:T(1,128)}', space=vmem, size = 0x12000, scoped, tag = 'internal scratch']
  #allocation2 [shape = 'f32[4,1]{1,0:T(4,128)}', space=vmem, size = 0x800, scoped, tag = 'scratch operand']
  #allocation3 [shape = 'f32[4,1]{1,0:T(4,128)}', space=vmem, size = 0x800, scoped, tag = 'scratch operand']
  #allocation4 [shape = 'f32[4,1]{1,0:T(4,128)}', space=vmem, size = 0x800, scoped, tag = 'scratch operand']
  %s0 = inlined_call_operand.vmem [shape: f32[4,1], index: 0, kind: input, shape index: {}]
  %s1 = inlined_call_operand.vmem [shape: f32[8,256], index: 1, kind: input, shape index: {}]
  %s2 = inlined_call_operand.vmem [shape: f32[4,512], index: 2, kind: input, shape index: {}]
  %s3 = inlined_call_operand.vmem [shape: bf16[4,512], index: 3, kind: input, shape index: {}]
  %s4 = inlined_call_operand.hbm [shape: f32[1,1], index: 4, kind: output, shape index: {}]
  %s5 = sld [smem:[#allocation0]]
  $region57: #{lovasz_softmax_loss.3} parent=0
    _
  %s7 = ssub.s32 1, %s5
  %s8 = scalar_select 0, %s7, %s5
  $region1: #{lovasz_softmax_loss.3} parent=0
    #allocation5 [shape = 'u8[512]{0}', space=vmem, size = 0x400, scoped, tag = 'output window, operand 0, single buffered']
    #allocation6 [shape = 's32[2]{0}', space=sflag, size = 0x8, scoped, tag = 'scoped memory for lovasz_softmax_loss.3']
    %9 = vsyncpa [#allocation6], 0
    loop: start=0, step=1, limit=4
    $region2: #{lovasz_softmax_loss.3} parent=1 // loop_pre_header
      _
    $region3: #{lovasz_softmax_loss.3} parent=1 // loop_header
      %s11 = sphi 0, %s15
      %p12 = scmp.ge.s32.totalorder %s11, 4
      %s19 = sphi 0, %s19
      %s21 = sphi 0, %s19
      %s22 = sphi 0, %s21
      %s36 = sphi 0, %s22
      %s40 = sphi 0, %s40
      %s42 = sphi 0, %s40
      %s43 = sphi 0, %s42
      %s57 = sphi 0, %s43
      %s63 = sphi 0, %s65
      %s66 = sphi 0, %s63
      %s67 = sphi 0, %s66
      %s83 = sphi 0, %s67
      %s89 = sphi 0, %s91
      %s92 = sphi 0, %s89
      %s93 = sphi 0, %s92
      %s109 = sphi 0, %s93
      %s113 = sphi 0, %s113
      %s115 = sphi 0, %s113
      %s116 = sphi 0, %s115
      %s130 = sphi 0, %s116
    $region4: #{lovasz_softmax_loss.3} parent=1 // loop_header_branch
      %14 = sbr.rel (%p12) target = $region8
    $region5: #{lovasz_softmax_loss.3} parent=1 // loop_body
      %s16 = ssub.s32 %s11, 1
      %s17 = ssub.s32 %s11, 2
      %s18 = sadd.s32 %s11, 1
      %s20 = sadd.s32 %s19, 1
      %p23 = scmp.eq.s32.totalorder %s11, 1
      %p24 = scmp.ne.s32.totalorder %s19, %s21
      %p25 = scmp.eq.s32.totalorder %s11, 0
      %p26 = por %p24, %p25
      %p27 = scmp.ne.s32.totalorder %s19, %s21
      %p28 = scmp.eq.s32.totalorder %s16, 1
      %p29 = por %p27, %p28
      %p30 = scmp.ne.s32.totalorder %s21, %s22
      %p31 = scmp.eq.s32.totalorder %s16, 0
      %p32 = por %p30, %p31
      %p33 = scmp.ne.s32.totalorder %s21, %s22
      %p34 = scmp.eq.s32.totalorder %s17, 1
      %p35 = por %p33, %p34
      %p37 = scmp.ne.s32.totalorder %s22, %s36
      %p38 = scmp.eq.s32.totalorder %s17, 0
      %p39 = por %p37, %p38
      %s41 = sadd.s32 %s40, 1
      %p44 = scmp.eq.s32.totalorder %s11, 1
      %p45 = scmp.ne.s32.totalorder %s40, %s42
      %p46 = scmp.eq.s32.totalorder %s11, 0
      %p47 = por %p45, %p46
      %p48 = scmp.ne.s32.totalorder %s40, %s42
      %p49 = scmp.eq.s32.totalorder %s16, 1
      %p50 = por %p48, %p49
      %p51 = scmp.ne.s32.totalorder %s42, %s43
      %p52 = scmp.eq.s32.totalorder %s16, 0
      %p53 = por %p51, %p52
      %p54 = scmp.ne.s32.totalorder %s42, %s43
      %p55 = scmp.eq.s32.totalorder %s17, 1
      %p56 = por %p54, %p55
      %p58 = scmp.ne.s32.totalorder %s43, %s57
      %p59 = scmp.eq.s32.totalorder %s17, 0
      %p60 = por %p58, %p59
      %s61 = ssub.s32 %s11, %s18
      %p62 = scmp.eq.s32.totalorder %s61, 0
      %s64 = sadd.s32 %s63, 1
      %s65 = scalar_select %p62, %s63, %s64
      %p68 = pneg %p62
      %p69 = scmp.eq.s32.totalorder %s11, 1
      %p70 = por %p68, %p69
      %p71 = scmp.ne.s32.totalorder %s63, %s66
      %p72 = scmp.eq.s32.totalorder %s11, 0
      %p73 = por %p71, %p72
      %p74 = scmp.ne.s32.totalorder %s63, %s66
      %p75 = scmp.eq.s32.totalorder %s16, 1
      %p76 = por %p74, %p75
      %p77 = scmp.ne.s32.totalorder %s66, %s67
      %p78 = scmp.eq.s32.totalorder %s16, 0
      %p79 = por %p77, %p78
      %p80 = scmp.ne.s32.totalorder %s66, %s67
      %p81 = scmp.eq.s32.totalorder %s17, 1
      %p82 = por %p80, %p81
      %p84 = scmp.ne.s32.totalorder %s67, %s83
      %p85 = scmp.eq.s32.totalorder %s17, 0
      %p86 = por %p84, %p85
      %s87 = ssub.s32 %s11, %s18
      %p88 = scmp.eq.s32.totalorder %s87, 0
      %s90 = sadd.s32 %s89, 1
      %s91 = scalar_select %p88, %s89, %s90
      %p94 = pneg %p88
      %p95 = scmp.eq.s32.totalorder %s11, 1
      %p96 = por %p94, %p95
      %p97 = scmp.ne.s32.totalorder %s89, %s92
      %p98 = scmp.eq.s32.totalorder %s11, 0
      %p99 = por %p97, %p98
      %p100 = scmp.ne.s32.totalorder %s89, %s92
      %p101 = scmp.eq.s32.totalorder %s16, 1
      %p102 = por %p100, %p101
      %p103 = scmp.ne.s32.totalorder %s92, %s93
      %p104 = scmp.eq.s32.totalorder %s16, 0
      %p105 = por %p103, %p104
      %p106 = scmp.ne.s32.totalorder %s92, %s93
      %p107 = scmp.eq.s32.totalorder %s17, 1
      %p108 = por %p106, %p107
      %p110 = scmp.ne.s32.totalorder %s93, %s109
      %p111 = scmp.eq.s32.totalorder %s17, 0
      %p112 = por %p110, %p111
      %s114 = sadd.s32 %s113, 1
      %p117 = scmp.eq.s32.totalorder %s11, 1
      %p118 = scmp.ne.s32.totalorder %s113, %s115
      %p119 = scmp.eq.s32.totalorder %s11, 0
      %p120 = por %p118, %p119
      %p121 = scmp.ne.s32.totalorder %s113, %s115
      %p122 = scmp.eq.s32.totalorder %s16, 1
      %p123 = por %p121, %p122
      %p124 = scmp.ne.s32.totalorder %s115, %s116
      %p125 = scmp.eq.s32.totalorder %s16, 0
      %p126 = por %p124, %p125
      %p127 = scmp.ne.s32.totalorder %s115, %s116
      %p128 = scmp.eq.s32.totalorder %s17, 1
      %p129 = por %p127, %p128
      %p131 = scmp.ne.s32.totalorder %s116, %s130
      %p132 = scmp.eq.s32.totalorder %s17, 0
      %p133 = por %p131, %p132
      %p134 = scmp.le.s32.totalorder 1, %s11
      %p135 = scmp.lt.s32.totalorder %s11, 3
      %p136 = pnand %p134, %p135
      %p137 = pneg %p136
      // Predicated region
      $region9: #{lovasz_softmax_loss.3} parent=5 // pred_check
        _
      $region10: #{lovasz_softmax_loss.3} parent=5 // pred_check_branch
        %139 = sbr.rel (%p136) target = $region12
      $region11: #{lovasz_softmax_loss.3} parent=5 // pred_region
        %s140 = ssub.s32 %s11, 1
        // Predicated region
        $region13: #{lovasz_softmax_loss.3} parent=11 // pred_check
          %p141 = pneg %p32
        $region14: #{lovasz_softmax_loss.3} parent=11 // pred_check_branch
          %143 = sbr.rel (%p141) target = $region16
        $region15: #{lovasz_softmax_loss.3} parent=11 // pred_region
          _
        $region16: #{lovasz_softmax_loss.3} parent=11 // pred_fallthru
          _
        // Predicated region
        $region17: #{lovasz_softmax_loss.3} parent=11 // pred_check
          %p144 = pneg %p53
        $region18: #{lovasz_softmax_loss.3} parent=11 // pred_check_branch
          %146 = sbr.rel (%p144) target = $region20
        $region19: #{lovasz_softmax_loss.3} parent=11 // pred_region
          _
        $region20: #{lovasz_softmax_loss.3} parent=11 // pred_fallthru
          _
      $region12: #{lovasz_softmax_loss.3} parent=5 // pred_fallthru
        _
      %p147 = scmp.lt.s32.totalorder %s11, 2
      // Predicated region
      $region21: #{lovasz_softmax_loss.3} parent=5 // pred_check
        %p148 = pneg %p147
      $region22: #{lovasz_softmax_loss.3} parent=5 // pred_check_branch
        %150 = sbr.rel (%p148) target = $region24
      $region23: #{lovasz_softmax_loss.3} parent=5 // pred_region
        // Predicated region
        $region25: #{lovasz_softmax_loss.3} parent=23 // pred_check
          %p151 = pneg %p73
        $region26: #{lovasz_softmax_loss.3} parent=23 // pred_check_branch
          %153 = sbr.rel (%p151) target = $region28
        $region27: #{lovasz_softmax_loss.3} parent=23 // pred_region
          %s154 = smul.u32 2, %s11
          %p155 = scmp.lt.s32.totalorder %s154, 3
          %s156 = scalar_select %p155, %s154, 3
          %s157 = smul.addr %s156, 4
          %s158 = scalar_lea.vmem %s2, %s157
          %s159 = smul.u32 2, %s11
        $region28: #{lovasz_softmax_loss.3} parent=23 // pred_fallthru
          _
        // Predicated region
        $region29: #{lovasz_softmax_loss.3} parent=23 // pred_check
          %p160 = pneg %p99
        $region30: #{lovasz_softmax_loss.3} parent=23 // pred_check_branch
          %162 = sbr.rel (%p160) target = $region32
        $region31: #{lovasz_softmax_loss.3} parent=23 // pred_region
          %s163 = smul.u32 2, %s11
          %p164 = scmp.lt.s32.totalorder %s163, 3
          %s165 = scalar_select %p164, %s163, 3
          %s166 = smul.addr %s165, 2
          %s167 = scalar_lea.vmem %s3, %s166
          %s168 = smul.u32 2, %s11
        $region32: #{lovasz_softmax_loss.3} parent=23 // pred_fallthru
          _
      $region24: #{lovasz_softmax_loss.3} parent=5 // pred_fallthru
        _
      %p169 = scmp.le.s32.totalorder 1, %s11
      %p170 = scmp.lt.s32.totalorder %s11, 3
      %p171 = pnand %p169, %p170
      %p172 = pneg %p171
      // Predicated region
      $region33: #{lovasz_softmax_loss.3} parent=5 // pred_check
        _
      $region34: #{lovasz_softmax_loss.3} parent=5 // pred_check_branch
        %174 = sbr.rel (%p171) target = $region36
      $region35: #{lovasz_softmax_loss.3} parent=5 // pred_region
        %s175 = ssub.s32 %s11, 1
        %p176 = pneg %p32
        %p177 = pneg %p29
        %p178 = pneg %p53
        %p179 = pneg %p50
        %s180 = smul.u32 2, %s16
        %p181 = scmp.lt.s32.totalorder %s180, 3
        %s182 = scalar_select %p181, %s180, 3
        %s183 = smul.addr %s182, 4
        %s184 = scalar_lea.vmem %s2, %s183
        %p185 = pneg %p79
        %p186 = pneg %p76
        %s187 = smul.u32 2, %s16
        %p188 = scmp.lt.s32.totalorder %s187, 3
        %s189 = scalar_select %p188, %s187, 3
        %s190 = smul.addr %s189, 2
        %s191 = scalar_lea.vmem %s3, %s190
        %p192 = pneg %p105
        %p193 = pneg %p102
        %p194 = pneg %p126
        %p195 = pneg %p123
        %s196 = smul.u32 2, %s16
        %p197 = scmp.lt.s32.totalorder %s196, 3
        %s198 = scalar_select %p197, %s196, 3
        %s199 = smul.addr %s198, 4
        %s200 = scalar_lea.vmem %s2, %s199
        %s201 = smul.u32 2, %s16
        %s202 = smul.u32 2, %s16
        %p203 = scmp.lt.s32.totalorder %s202, 3
        %s204 = scalar_select %p203, %s202, 3
        %s205 = smul.addr %s204, 2
        %s206 = scalar_lea.vmem %s3, %s205
        %s207 = smul.u32 2, %s16
        %p208 = scmp.eq.s32.totalorder %s16, 0
        // Predicated region
        $region37: #{lovasz_softmax_loss.3} parent=35 // pred_check
          %p209 = pneg %p208
        $region38: #{lovasz_softmax_loss.3} parent=35 // pred_check_branch
          %211 = sbr.rel (%p209) target = $region40
        $region39: #{lovasz_softmax_loss.3} parent=35 // pred_region
          %vm212 = vcmask 3072
          %213 = vst.msk [vmem:[#allocation2] sm:$0xf] %vm212, 0.0
          %214 = vst.msk [vmem:[#allocation3] sm:$0xf] %vm212, 0.0
          %215 = vst.msk [vmem:[#allocation4] sm:$0xf] %vm212, 0.0
        $region40: #{lovasz_softmax_loss.3} parent=35 // pred_fallthru
          _
        %v216 = vld [vmem:[%s0] sm:$0xf]
        %v217 = vld [vmem:[%s206] sm:$0xf]
        %v218 = vunpack.c.l.bf16 %v217
        %v219 = vld [vmem:[%s200] sm:$0xff]
        %v220 = vsub.f32 0.0, %v219
        %v221 = vmax.f32 %v220, 0.0
        %v223 = vcombine.high %v218, %v218
        %225 = vrot.lane.b32.xlu0 %v218, 1
        %v226 = vpop.permute.xlu0 %225
        %227 = vrot.lane.b32.xlu0 %v223, 1
        %v228 = vpop.permute.xlu0 %227
        %v229 = vlaneseq
        %v230 = vand.u32 %v229, 127
        %vm231 = vcmp.lt.s32.totalorder %v230, 1
        %v232 = vsel %vm231, %v226, %v228
        %v233 = vsel %vm231, %v228, %v226
        %v234 = vld [vmem:[%s1] ss:$8 sm:$0x3]
        %v236 = vlaneseq
        %v237 = vshrl.u32 %v236, 7
        %v238 = vsub.s32 0, %v237
        %v239 = vrot.slane %v234, %v238
        %v240 = vlaneseq
        %v241 = vshrl.u32 %v240, 7
        %v242 = vsub.s32 1, %v241
        %v243 = vrot.slane %v234, %v242
        %v246 = vmul.f32 %v233, %v239
        %v247 = vmul.f32 %v232, %v243
        %v250 = vcombine.low %v246, %v247
        %v252 = vadd.f32 %v218, %v250
        %v254 = vcombine.high %v252, %v252
        %256 = vrot.lane.b32.xlu0 %v252, 2
        %v257 = vpop.permute.xlu0 %256
        %258 = vrot.lane.b32.xlu0 %v254, 2
        %v259 = vpop.permute.xlu0 %258
        %vm260 = vcmp.lt.s32.totalorder %v230, 2
        %v261 = vsel %vm260, %v257, %v259
        %v262 = vsel %vm260, %v259, %v257
        %s263 = scalar_lea.vmem %s1, 1
        %v264 = vld [vmem:[%s263] ss:$8 sm:$0x3]
        %v266 = vlaneseq
        %v267 = vshrl.u32 %v266, 7
        %v268 = vsub.s32 0, %v267
        %v269 = vrot.slane %v264, %v268
        %v270 = vlaneseq
        %v271 = vshrl.u32 %v270, 7
        %v272 = vsub.s32 1, %v271
        %v273 = vrot.slane %v264, %v272
        %v276 = vmul.f32 %v262, %v269
        %v277 = vmul.f32 %v261, %v273
        %v280 = vcombine.low %v276, %v277
        %v282 = vadd.f32 %v252, %v280
        %v284 = vcombine.high %v282, %v282
        %286 = vrot.lane.b32.xlu0 %v282, 4
        %v287 = vpop.permute.xlu0 %286
        %288 = vrot.lane.b32.xlu0 %v284, 4
        %v289 = vpop.permute.xlu0 %288
        %vm290 = vcmp.lt.s32.totalorder %v230, 4
        %v291 = vsel %vm290, %v287, %v289
        %v292 = vsel %vm290, %v289, %v287
        %s293 = scalar_lea.vmem %s1, 2
        %v294 = vld [vmem:[%s293] ss:$8 sm:$0x3]
        %v296 = vlaneseq
        %v297 = vshrl.u32 %v296, 7
        %v298 = vsub.s32 0, %v297
        %v299 = vrot.slane %v294, %v298
        %v300 = vlaneseq
        %v301 = vshrl.u32 %v300, 7
        %v302 = vsub.s32 1, %v301
        %v303 = vrot.slane %v294, %v302
        %v306 = vmul.f32 %v292, %v299
        %v307 = vmul.f32 %v291, %v303
        %v310 = vcombine.low %v306, %v307
        %v312 = vadd.f32 %v282, %v310
        %v314 = vcombine.high %v312, %v312
        %316 = vrot.lane.b32.xlu0 %v312, 8
        %v317 = vpop.permute.xlu0 %316
        %318 = vrot.lane.b32.xlu0 %v314, 8
        %v319 = vpop.permute.xlu0 %318
        %vm320 = vcmp.lt.s32.totalorder %v230, 8
        %v321 = vsel %vm320, %v317, %v319
        %v322 = vsel %vm320, %v319, %v317
        %s323 = scalar_lea.vmem %s1, 3
        %v324 = vld [vmem:[%s323] ss:$8 sm:$0x3]
        %v326 = vlaneseq
        %v327 = vshrl.u32 %v326, 7
        %v328 = vsub.s32 0, %v327
        %v329 = vrot.slane %v324, %v328
        %v330 = vlaneseq
        %v331 = vshrl.u32 %v330, 7
        %v332 = vsub.s32 1, %v331
        %v333 = vrot.slane %v324, %v332
        %v336 = vmul.f32 %v322, %v329
        %v337 = vmul.f32 %v321, %v333
        %v340 = vcombine.low %v336, %v337
        %v342 = vadd.f32 %v312, %v340
        %v344 = vcombine.high %v342, %v342
        %346 = vrot.lane.b32.xlu0 %v342, 16
        %v347 = vpop.permute.xlu0 %346
        %348 = vrot.lane.b32.xlu0 %v344, 16
        %v349 = vpop.permute.xlu0 %348
        %vm350 = vcmp.lt.s32.totalorder %v230, 16
        %v351 = vsel %vm350, %v347, %v349
        %v352 = vsel %vm350, %v349, %v347
        %s353 = scalar_lea.vmem %s1, 4
        %v354 = vld [vmem:[%s353] ss:$8 sm:$0x3]
        %v356 = vlaneseq
        %v357 = vshrl.u32 %v356, 7
        %v358 = vsub.s32 0, %v357
        %v359 = vrot.slane %v354, %v358
        %v360 = vlaneseq
        %v361 = vshrl.u32 %v360, 7
        %v362 = vsub.s32 1, %v361
        %v363 = vrot.slane %v354, %v362
        %v366 = vmul.f32 %v352, %v359
        %v367 = vmul.f32 %v351, %v363
        %v370 = vcombine.low %v366, %v367
        %v372 = vadd.f32 %v342, %v370
        %v374 = vcombine.high %v372, %v372
        %376 = vrot.lane.b32.xlu0 %v372, 32
        %v377 = vpop.permute.xlu0 %376
        %378 = vrot.lane.b32.xlu0 %v374, 32
        %v379 = vpop.permute.xlu0 %378
        %vm380 = vcmp.lt.s32.totalorder %v230, 32
        %v381 = vsel %vm380, %v377, %v379
        %v382 = vsel %vm380, %v379, %v377
        %s383 = scalar_lea.vmem %s1, 5
        %v384 = vld [vmem:[%s383] ss:$8 sm:$0x3]
        %v386 = vlaneseq
        %v387 = vshrl.u32 %v386, 7
        %v388 = vsub.s32 0, %v387
        %v389 = vrot.slane %v384, %v388
        %v390 = vlaneseq
        %v391 = vshrl.u32 %v390, 7
        %v392 = vsub.s32 1, %v391
        %v393 = vrot.slane %v384, %v392
        %v396 = vmul.f32 %v382, %v389
        %v397 = vmul.f32 %v381, %v393
        %v400 = vcombine.low %v396, %v397
        %v402 = vadd.f32 %v372, %v400
        %v404 = vcombine.high %v402, %v402
        %406 = vrot.lane.b32.xlu0 %v402, 64
        %v407 = vpop.permute.xlu0 %406
        %408 = vrot.lane.b32.xlu0 %v404, 64
        %v409 = vpop.permute.xlu0 %408
        %vm410 = vcmp.lt.s32.totalorder %v230, 64
        %v411 = vsel %vm410, %v407, %v409
        %v412 = vsel %vm410, %v409, %v407
        %s413 = scalar_lea.vmem %s1, 6
        %v414 = vld [vmem:[%s413] ss:$8 sm:$0x3]
        %v416 = vlaneseq
        %v417 = vshrl.u32 %v416, 7
        %v418 = vsub.s32 0, %v417
        %v419 = vrot.slane %v414, %v418
        %v420 = vlaneseq
        %v421 = vshrl.u32 %v420, 7
        %v422 = vsub.s32 1, %v421
        %v423 = vrot.slane %v414, %v422
        %v426 = vmul.f32 %v412, %v419
        %v427 = vmul.f32 %v411, %v423
        %v430 = vcombine.low %v426, %v427
        %v432 = vadd.f32 %v402, %v430
        %v434 = vcombine.high %v432, %v432
        %s436 = scalar_lea.vmem %s1, 7
        %v437 = vld [vmem:[%s436] ss:$8 sm:$0x3]
        %v439 = vlaneseq
        %v440 = vshrl.u32 %v439, 7
        %v441 = vsub.s32 0, %v440
        %v442 = vrot.slane %v437, %v441
        %v443 = vlaneseq
        %v444 = vshrl.u32 %v443, 7
        %v445 = vsub.s32 1, %v444
        %v446 = vrot.slane %v437, %v445
        %v449 = vmul.f32 %v434, %v442
        %v450 = vmul.f32 %v432, %v446
        %v453 = vcombine.low %v449, %v450
        %v455 = vadd.f32 %v432, %v453
        %v456 = vld [vmem:[#allocation2] sm:$0xf]
        %458 = vset.pattern.permute.xlu0 0
        %459 = vperm.xlu0 %458, %v456
        %v460 = vpop.permute.xlu0 %459
        %v462 = vunpack.c.l.s4 839922192
        %v463 = vunpack.c.0.s8 %v462
        %v464 = vlaneseq
        %v465 = vshrl.u32 %v464, 7
        %v466 = vsub.s32 %v463, %v465
        %v467 = vrot.slane %v460, %v466
        %v469 = vadd.f32 %v455, %v467
        %v470 = vadd.s32 %v230, 128
        %s471 = smul.u32 %s16, 256
        %v472 = vstv %s471
        %v473 = vadd.s32 %v230, %v472
        %v474 = vadd.s32 %v470, %v472
        %v475 = vcvt.s32.f32 %v473
        %v476 = vcvt.s32.f32 %v474
        %v477 = vadd.f32 %v475, 1.0
        %v478 = vadd.f32 %v476, 1.0
        %480 = vset.pattern.permute.xlu0 0
        %481 = vperm.xlu0 %480, %v216
        %v482 = vpop.permute.xlu0 %481
        %v485 = vcombine.high %v469, %v469
        %v487 = vsub.f32 %v482, %v469
        %v488 = vsub.f32 %v482, %v485
        %v489 = vsub.f32 %v477, %v469
        %v490 = vsub.f32 %v478, %v485
        %v491 = vadd.f32 %v482, %v489
        %v492 = vadd.f32 %v482, %v490
        %v493 = vrcp.pop %v491
        %v494 = vrcp.pop %v492
        %v495 = vmul.f32 %v487, %v493
        %v496 = vmul.f32 %v488, %v494
        %v497 = vsub.f32 1.0, %v495
        %v498 = vsub.f32 1.0, %v496
        %499 = vrot.lane.b32.xlu0 %v497, 1
        %v500 = vpop.permute.xlu0 %499
        %501 = vrot.lane.b32.xlu0 %v498, 1
        %v502 = vpop.permute.xlu0 %501
        %v503 = vsel %vm231, %v500, %v502
        %v504 = vsel %vm231, %v502, %v500
        %vm505 = vcmp.eq.s32.totalorder %v230, 0
        %vm506 = vcmp.eq.s32.totalorder %v470, 0
        %v507 = vld [vmem:[#allocation3] sm:$0xf]
        %509 = vset.pattern.permute.xlu0 0
        %510 = vperm.xlu0 %509, %v507
        %v511 = vpop.permute.xlu0 %510
        %v513 = vsel %vm505, %v511, %v504
        %v514 = vsel %vm506, %v511, %v503
        %v515 = vsub.f32 %v497, %v513
        %v516 = vsub.f32 %v498, %v514
        %v517 = vld [vmem:[#allocation4] sm:$0xf]
        %v520 = vcombine.low %v515, %v516
        %v522 = vmul.f32 %v221, %v520
        %v524 = vcombine.high %v522, %v522
        %vm526 = vcmask 1043456
        %v527 = vsel %vm526, %v522, 0.0
        %v528 = vsel %vm526, %v524, 0.0
        %v529 = vadd.f32 %v527, %v528
        %530 = vadd.xlane.f32.xlu0 %v529
        %v531 = vpop.xlane.xlu0 %530
        %v532 = vadd.f32 %v517, %v531
        %vm533 = vcmask 3072
        %534 = vst.msk [vmem:[#allocation4] sm:$0xf] %vm533, %v532
        %v535 = vld [vmem:[#allocation2] sm:$0xf]
        %v536 = vsel %vm526, %v218, 0.0
        %v537 = vsel %vm526, %v223, 0.0
        %v538 = vadd.f32 %v536, %v537
        %539 = vadd.xlane.f32.xlu0 %v538
        %v540 = vpop.xlane.xlu0 %539
        %v541 = vadd.f32 %v535, %v540
        %542 = vst.msk [vmem:[#allocation2] sm:$0xf] %vm533, %v541
        %s543 = sadd.s32 %s16, 1
        %s544 = smul.u32 %s543, 256
        %s545 = scvt.s32.f32 %s544
        %v546 = vstv %s545
        %v547 = vsub.f32 %v546, %v541
        %v548 = vadd.f32 %v216, %v547
        %v549 = vsub.f32 %v216, %v541
        %v550 = vrcp.pop %v548
        %v551 = vmul.f32 %v549, %v550
        %v552 = vsub.f32 1.0, %v551
        %553 = vst.msk [vmem:[#allocation3] sm:$0xf] %vm533, %v552
        %p554 = scmp.eq.s32.totalorder %s16, 1
        // Predicated region
        $region41: #{lovasz_softmax_loss.3} parent=35 // pred_check
          %p555 = pneg %p554
        $region42: #{lovasz_softmax_loss.3} parent=35 // pred_check_branch
          %557 = sbr.rel (%p555) target = $region44
        $region43: #{lovasz_softmax_loss.3} parent=35 // pred_region
          %vm558 = vcmp.gt.f32.partialorder %v216, 0.0
          %v559 = vsel %vm558, 1, 0
          %v560 = vcvt.s32.f32 %v559
          %v561 = vld [vmem:[#allocation4] sm:$0xf]
          %v562 = vmul.f32 %v561, %v560
          %v563 = vsel %vm533, %v562, 0.0
          %v564 = vrot.slane %v563, 4
          %v565 = vadd.f32 %v563, %v564
          %v566 = vrot.slane %v565, 2
          %v567 = vadd.f32 %v565, %v566
          %v568 = vrot.slane %v567, 1
          %v569 = vadd.f32 %v567, %v568
          %v570 = vsel %vm533, %v560, 0.0
          %v571 = vrot.slane %v570, 4
          %v572 = vadd.f32 %v570, %v571
          %v573 = vrot.slane %v572, 2
          %v574 = vadd.f32 %v572, %v573
          %v575 = vrot.slane %v574, 1
          %v576 = vadd.f32 %v574, %v575
          %v577 = vmax.f32 %v576, 1.0
          %v578 = vrcp.pop %v577
          %v579 = vmul.f32 %v569, %v578
          %vm580 = vcmask 0
          %581 = vst.msk [vmem:[#allocation5] sm:$0x1] %vm580, %v579
        $region44: #{lovasz_softmax_loss.3} parent=35 // pred_fallthru
          _
        // Predicated region
        $region45: #{lovasz_softmax_loss.3} parent=35 // pred_check
          %p582 = pneg %p123
        $region46: #{lovasz_softmax_loss.3} parent=35 // pred_check_branch
          %584 = sbr.rel (%p582) target = $region48
        $region47: #{lovasz_softmax_loss.3} parent=35 // pred_region
          %s586 = ssub.s32 16, 16
          %587 = vsyncadd [#allocation6], %s586
          %s589 = sshll.u32 [#allocation5], 4
          %s590 = int_to_ptr.vmem [resolvable:$true] %s589
          %592 = dma.vmem_to_hbm [thread:$0]  %s590, 16, %s4, [#allocation6]
        $region48: #{lovasz_softmax_loss.3} parent=35 // pred_fallthru
          _
        // Predicated region
        $region49: #{lovasz_softmax_loss.3} parent=35 // pred_check
          %p593 = pneg %p123
        $region50: #{lovasz_softmax_loss.3} parent=35 // pred_check_branch
          %595 = sbr.rel (%p593) target = $region52
        $region51: #{lovasz_softmax_loss.3} parent=35 // pred_region
          %596 = dma.done [#allocation6], 16
        $region52: #{lovasz_softmax_loss.3} parent=35 // pred_fallthru
          _
      $region36: #{lovasz_softmax_loss.3} parent=5 // pred_fallthru
        _
      %p597 = scmp.le.s32.totalorder 2, %s11
      // Predicated region
      $region53: #{lovasz_softmax_loss.3} parent=5 // pred_check
        %p598 = pneg %p597
      $region54: #{lovasz_softmax_loss.3} parent=5 // pred_check_branch
        %600 = sbr.rel (%p598) target = $region56
      $region55: #{lovasz_softmax_loss.3} parent=5 // pred_region
        %s601 = ssub.s32 %s11, 2
      $region56: #{lovasz_softmax_loss.3} parent=5 // pred_fallthru
        _
    $region6: #{lovasz_softmax_loss.3} parent=1 // loop_footer
      %s15 = sadd.s32 1, %s11
    $region7: #{lovasz_softmax_loss.3} parent=1 // loop_footer_branch
      %10 = sbr.rel target = $region3
    $region8: #{lovasz_softmax_loss.3} parent=1 // loop_exit
      _
    %602 = vsyncpa [#allocation6], 1
    %s603 = scalar_lea.sflag [#allocation6], 1
    %604 = vsyncpa %s603, 1

</llo_original>
